<compile_context>
chip_gen: v7x
topology: tpu7x:2x2x1
jax: 0.10.0
libtpu: 0.0.40
codegen_flags: <defaults>
</compile_context>

<pallas_src>
import functools

import jax
import jax.numpy as jnp
from jax import lax
from jax.experimental import pallas as pl
from jax.experimental.pallas import tpu as pltpu


_VMEM_TILE_BUDGET = 24 * 1024 * 1024   # resident working-set target per step
_VMEM_LIMIT_BYTES = 48 * 1024 * 1024   # safe on v5e/v6e (128 MiB) and v7x (64 MiB)


def _round_up(x, m):
    return (x + m - 1) // m * m


def _conv1d_kernel(x_ref, h_ref, w_ref, b_ref, o_ref, *, K, TL, dilation, fuse_taps):
    """One (batch, L-tile) grid step.

    x_ref: (1, TL, C_in_pad)            main input rows for this output tile
    h_ref: (1, 1, HALO_PAD, C_in_pad)   halo rows just past the tile
    w_ref: (K*C_in_pad, C_out_pad)      weights, tap-major rows
    b_ref: (1, C_out_pad)               bias (f32)
    o_ref: (1, TL, C_out_pad)           output tile
    """
    c_in = x_ref.shape[2]
    c_out = o_ref.shape[2]

    # Full input window for this tile: TL rows + right halo.
    x_win = jnp.concatenate([x_ref[0, :, :], h_ref[0, 0, :, :]], axis=0)

    # Fold the bias into the accumulator init (saves a full-tile VPU add).
    acc = jnp.broadcast_to(b_ref[...].astype(jnp.float32), (TL, c_out))

    if fuse_taps and K > 1:
        # im2col: one matmul with contraction K*C_in_pad fills the MXU when the
        # per-tap contraction (C_in_pad) is below the native width.
        lhs = jnp.concatenate(
            [x_win[k * dilation:k * dilation + TL, :] for k in range(K)], axis=1)
        acc = acc + jnp.dot(lhs, w_ref[...], preferred_element_type=jnp.float32)
    else:
        # K is tiny and static: unrolled loop, one MXU matmul per tap.
        for k in range(K):
            lhs = x_win[k * dilation:k * dilation + TL, :]
            w_k = w_ref[k * c_in:(k + 1) * c_in, :]
            acc = acc + jnp.dot(lhs, w_k, preferred_element_type=jnp.float32)

    o_ref[0, :, :] = acc.astype(o_ref.dtype)


def _choose_l_tile(L_out, C_in_pad, C_out_pad, K, halo_pad, in_bytes, out_bytes,
                   fuse_taps):
    """Pick the L tile so the resident VMEM working set stays under budget."""
    # Step-constant residents (double-buffered weight / halo strip / bias).
    fixed = 2 * K * C_in_pad * C_out_pad * in_bytes
    fixed += 2 * halo_pad * C_in_pad * in_bytes
    fixed += 2 * C_out_pad * 4
    # Per-output-row residents: double-buffered x/out tiles, f32 accumulator,
    # plus the im2col window if taps are fused.
    per_row = 2 * C_in_pad * in_bytes + 2 * C_out_pad * out_bytes + C_out_pad * 4
    if fuse_taps:
        per_row += K * C_in_pad * in_bytes
    tl = (_VMEM_TILE_BUDGET - fixed) // per_row
    tl = max(8, min(int(tl), 1024))
    tl = min(tl, _round_up(L_out, 8))
    tl = max(8, (tl // 8) * 8)
    tl = max(tl, halo_pad)       # the halo strip must fit within one tile width
    return tl


def conv_norm_forward(x, weight, bias, *, stride=1, dilation=1, padding=None,
                      compute_dtype=None, l_tile=None):
    """Forward pass of ConvNorm.

    x:      (N, C_in, L)        -- same NCL convention as torch.nn.Conv1d
    weight: (C_out, C_in, K)
    bias:   (C_out,)
    returns (N, C_out, L_out)

    compute_dtype: dtype fed to the MXU (e.g. jnp.bfloat16 to halve HBM/VMEM
        traffic); accumulation is always f32 and the output keeps x.dtype.
    """
    if stride != 1:
        raise NotImplementedError("only stride=1 (the ConvNorm default) is implemented")

    N, C_in, L = x.shape
    C_out, _, K = weight.shape
    if padding is None:
        assert K % 2 == 1
        padding = dilation * (K - 1) // 2

    halo = dilation * (K - 1)
    L_out = (L + 2 * padding - halo - 1) // stride + 1
    if L_out <= 0:
        raise ValueError(f"non-positive output length L_out={L_out}")

    out_dtype = x.dtype
    if compute_dtype is None:
        compute_dtype = x.dtype

    # Lane-dense channel padding (multiples of 128 lanes).
    C_in_pad = _round_up(C_in, 128)
    C_out_pad = _round_up(C_out, 128)
    HALO_PAD = max(8, _round_up(max(halo, 1), 8))

    fuse_taps = (C_in_pad < 256) and (K > 1)

    in_bytes = jnp.dtype(compute_dtype).itemsize
    out_bytes = jnp.dtype(out_dtype).itemsize
    if l_tile is None:
        TL = _choose_l_tile(L_out, C_in_pad, C_out_pad, K, HALO_PAD,
                            in_bytes, out_bytes, fuse_taps)
    else:
        TL = max(HALO_PAD, max(8, (int(l_tile) // 8) * 8))

    num_lt = pl.cdiv(L_out, TL)
    L_tiles = num_lt * TL
    L_pad_total = (num_lt + 1) * TL          # room for the tile-shifted halo extraction

    # ---- wrapper-side glue (XLA): layout change, zero pad, weight re-layout ----
    x_nlc = jnp.transpose(x, (0, 2, 1)).astype(compute_dtype)        # (N, L, C_in)
    right_pad = L_pad_total - padding - L
    x_pad = jnp.pad(x_nlc, ((0, 0), (padding, right_pad), (0, C_in_pad - C_in)))

    # Halo strip: for output tile l we need rows [l*TL, l*TL + TL + halo) of
    # x_pad; the main block gives the first TL rows, this strip gives the rest.
    x_halo = x_pad[:, TL:, :].reshape(N, num_lt, TL, C_in_pad)[:, :, :HALO_PAD, :]

    w_kio = jnp.transpose(weight, (2, 1, 0))                          # (K, C_in, C_out)
    w_pad = jnp.pad(w_kio, ((0, 0), (0, C_in_pad - C_in), (0, C_out_pad - C_out)))
    w_2d = w_pad.reshape(K * C_in_pad, C_out_pad).astype(compute_dtype)
    b_pad = jnp.pad(bias.astype(jnp.float32), (0, C_out_pad - C_out)).reshape(1, C_out_pad)

    kernel = functools.partial(_conv1d_kernel, K=K, TL=TL, dilation=dilation,
                               fuse_taps=fuse_taps)

    bytes_accessed = (x_pad.size * x_pad.dtype.itemsize
                      + x_halo.size * x_halo.dtype.itemsize
                      + w_2d.size * w_2d.dtype.itemsize
                      + b_pad.size * b_pad.dtype.itemsize
                      + N * L_tiles * C_out_pad * out_bytes)

    out_nlc = pl.pallas_call(
        kernel,
        out_shape=jax.ShapeDtypeStruct((N, L_tiles, C_out_pad), out_dtype),
        grid_spec=pltpu.PrefetchScalarGridSpec(
            num_scalar_prefetch=0,
            grid=(N, num_lt),
            in_specs=[
                pl.BlockSpec((1, TL, C_in_pad), lambda n, l: (n, l, 0)),
                pl.BlockSpec((1, 1, HALO_PAD, C_in_pad), lambda n, l: (n, l, 0, 0)),
                pl.BlockSpec((K * C_in_pad, C_out_pad), lambda n, l: (0, 0)),
                pl.BlockSpec((1, C_out_pad), lambda n, l: (0, 0)),
            ],
            out_specs=pl.BlockSpec((1, TL, C_out_pad), lambda n, l: (n, l, 0)),
        ),
        compiler_params=pltpu.CompilerParams(
            dimension_semantics=("parallel", "parallel"),
            vmem_limit_bytes=_VMEM_LIMIT_BYTES,
        ),
        cost_estimate=pl.CostEstimate(
            flops=2 * N * L_out * K * C_in * C_out,
            transcendentals=0,
            bytes_accessed=int(bytes_accessed),
        ),
    )(x_pad, x_halo, w_2d, b_pad)

    out = out_nlc[:, :L_out, :C_out]
    return jnp.transpose(out, (0, 2, 1))                              # (N, C_out, L_out)


def _init_conv_norm_params(key, in_channels, out_channels, kernel_size):
    """Deterministic param init matching ConvNorm.__init__ semantics.

    weight: xavier_uniform_ with gain = calculate_gain('linear') = 1.0
    bias:   torch Conv1d default, U(-1/sqrt(fan_in), 1/sqrt(fan_in))
    """
    kw, kb = jax.random.split(key)
    fan_in = in_channels * kernel_size
    fan_out = out_channels * kernel_size
    w_bound = (6.0 / (fan_in + fan_out)) ** 0.5
    weight = jax.random.uniform(
        kw, (out_channels, in_channels, kernel_size),
        minval=-w_bound, maxval=w_bound, dtype=jnp.float32)
    b_bound = 1.0 / (fan_in ** 0.5)
    bias = jax.random.uniform(
        kb, (out_channels,), minval=-b_bound, maxval=b_bound, dtype=jnp.float32)
    return weight, bias


def _reference_conv1d(x, weight, bias, padding, dilation):
    out = lax.conv_general_dilated(
        x, weight,
        window_strides=(1,),
        padding=[(padding, padding)],
        rhs_dilation=(dilation,),
        dimension_numbers=("NCH", "OIH", "NCH"),
    )
    return out + bias[None, :, None]


if __name__ == "__main__":
    key = jax.random.PRNGKey(0)

    # (N, C_in, C_out, L, K, dilation, compute_dtype, l_tile, tol)
    cases = [
        (2, 4, 8, 16, 3, 1, None,          None, 1e-4),   # 'same' conv, single L tile
        (2, 4, 8, 16, 1, 1, None,          None, 1e-4),   # ConvNorm default: pointwise
        (2, 4, 8, 40, 5, 2, None,          16,   1e-4),   # dilated, multi-tile L + halo
        (2, 4, 8, 16, 3, 1, jnp.bfloat16,  None, 5e-2),   # bf16 compute path
    ]

    for i, (N, C_IN, C_OUT, L, K, dil, cdt, ltile, tol) in enumerate(cases):
        kx, kp = jax.random.split(jax.random.fold_in(key, i))
        x = jax.random.normal(kx, (N, C_IN, L), dtype=jnp.float32)
        weight, bias = _init_conv_norm_params(kp, C_IN, C_OUT, K)

        out = conv_norm_forward(x, weight, bias, dilation=dil,
                                compute_dtype=cdt, l_tile=ltile)
        out = jax.block_until_ready(out)

        padding = dil * (K - 1) // 2
        ref = _reference_conv1d(x, weight, bias, padding, dil)
        assert out.shape == ref.shape, f"case {i}: {out.shape} vs {ref.shape}"
        err = float(jnp.max(jnp.abs(out - ref)))
        assert jnp.allclose(out, ref, atol=tol, rtol=tol), f"case {i}: max err {err}"

    print("KERNEL_OK")
</pallas_src>

<mosaic_0001>
module attributes {stable_mosaic.version = 11 : i64} {
  func.func @_conv1d_kernel(%arg0: i32, %arg1: i32, %arg2: memref<1x16x128xf32, #tpu.memory_space<vmem>>, %arg3: memref<1x1x8x128xf32, #tpu.memory_space<vmem>>, %arg4: memref<384x128xf32, #tpu.memory_space<vmem>>, %arg5: memref<1x128xf32, #tpu.memory_space<vmem>>, %arg6: memref<1x16x128xf32, #tpu.memory_space<vmem>>) attributes {dimension_semantics = [#tpu.dimension_semantics<parallel>, #tpu.dimension_semantics<parallel>], iteration_bounds = array<i64: 2, 1>, scalar_prefetch = 0 : i64, scratch_operands = 0 : i64, tpu.core_type = #tpu.core_type<tc>, window_params = [{transform_indices = @transform_0, window_bounds = array<i64: 1, 16, 128>}, {transform_indices = @transform_1, window_bounds = array<i64: 1, 1, 8, 128>}, {pipeline_mode = #tpu.pipeline_mode<synchronous>, transform_indices = @transform_2, window_bounds = array<i64: 384, 128>}, {pipeline_mode = #tpu.pipeline_mode<synchronous>, transform_indices = @transform_3, window_bounds = array<i64: 1, 128>}, {transform_indices = @transform_4, window_bounds = array<i64: 1, 16, 128>}]} {
    %c0 = arith.constant 0 : index
    %c0_0 = arith.constant 0 : index
    %c0_1 = arith.constant 0 : index
    %0 = vector.load %arg2[%c0, %c0_0, %c0_1] : memref<1x16x128xf32, #tpu.memory_space<vmem>>, vector<1x16x128xf32>
    %1 = vector.shape_cast %0 : vector<1x16x128xf32> to vector<16x128xf32>
    %c0_2 = arith.constant 0 : index
    %c0_3 = arith.constant 0 : index
    %c0_4 = arith.constant 0 : index
    %c0_5 = arith.constant 0 : index
    %2 = vector.load %arg3[%c0_2, %c0_3, %c0_4, %c0_5] : memref<1x1x8x128xf32, #tpu.memory_space<vmem>>, vector<1x1x8x128xf32>
    %3 = vector.shape_cast %2 : vector<1x1x8x128xf32> to vector<8x128xf32>
    %4 = tpu.concatenate %1, %3 in 0 : vector<16x128xf32>, vector<8x128xf32> -> vector<24x128xf32>
    %c0_6 = arith.constant 0 : index
    %c0_7 = arith.constant 0 : index
    %5 = vector.load %arg5[%c0_6, %c0_7] : memref<1x128xf32, #tpu.memory_space<vmem>>, vector<1x128xf32>
    %6 = vector.shape_cast %5 : vector<1x128xf32> to vector<1x128xf32>
    %7 = vector.broadcast %6 : vector<1x128xf32> to vector<16x128xf32>
    %8 = vector.extract_strided_slice %4 {offsets = [0, 0], sizes = [16, 128], strides = [1, 1]} : vector<24x128xf32> to vector<16x128xf32>
    %9 = vector.extract_strided_slice %4 {offsets = [1, 0], sizes = [16, 128], strides = [1, 1]} : vector<24x128xf32> to vector<16x128xf32>
    %10 = vector.extract_strided_slice %4 {offsets = [2, 0], sizes = [16, 128], strides = [1, 1]} : vector<24x128xf32> to vector<16x128xf32>
    %11 = tpu.concatenate %8, %9, %10 in 1 : vector<16x128xf32>, vector<16x128xf32>, vector<16x128xf32> -> vector<16x384xf32>
    %c0_8 = arith.constant 0 : index
    %c0_9 = arith.constant 0 : index
    %12 = vector.load %arg4[%c0_8, %c0_9] : memref<384x128xf32, #tpu.memory_space<vmem>>, vector<384x128xf32>
    %cst = arith.constant dense<0.000000e+00> : vector<16x128xf32>
    %13 = tpu.matmul %11, %12, %cst {dimension_numbers = #tpu.dot_dimension_numbers<[1], [0], [0], [1], [0, 0, 1, 1], [], []>} : vector<16x384xf32>, vector<384x128xf32>, vector<16x128xf32> -> vector<16x128xf32>
    %14 = arith.addf %7, %13 : vector<16x128xf32>
    %c0_10 = arith.constant 0 : index
    %c0_11 = arith.constant 0 : index
    %c0_12 = arith.constant 0 : index
    %15 = vector.load %arg6[%c0_10, %c0_11, %c0_12] : memref<1x16x128xf32, #tpu.memory_space<vmem>>, vector<1x16x128xf32>
    %16 = vector.shape_cast %15 : vector<1x16x128xf32> to vector<16x128xf32>
    %17 = vector.shape_cast %14 : vector<16x128xf32> to vector<1x16x128xf32>
    tpu.vector_store %arg6[%c0_10, %c0_11, %c0_12], %17 {strides = array<i32>} : memref<1x16x128xf32, #tpu.memory_space<vmem>>, vector<1x16x128xf32>,
    return
  }
  func.func @transform_0(%arg0: i32, %arg1: i32) -> (i32, i32, i32) {
    %c0_i32 = arith.constant 0 : i32
    %c0_i32_0 = arith.constant 0 : i32
    return %arg0, %arg1, %c0_i32 : i32, i32, i32
  }
  func.func @transform_1(%arg0: i32, %arg1: i32) -> (i32, i32, i32, i32) {
    %c0_i32 = arith.constant 0 : i32
    %c0_i32_0 = arith.constant 0 : i32
    %c0_i32_1 = arith.constant 0 : i32
    return %arg0, %arg1, %c0_i32, %c0_i32_0 : i32, i32, i32, i32
  }
  func.func @transform_2(%arg0: i32, %arg1: i32) -> (i32, i32) {
    %c0_i32 = arith.constant 0 : i32
    %c0_i32_0 = arith.constant 0 : i32
    %c0_i32_1 = arith.constant 0 : i32
    return %c0_i32, %c0_i32_0 : i32, i32
  }
  func.func @transform_3(%arg0: i32, %arg1: i32) -> (i32, i32) {
    %c0_i32 = arith.constant 0 : i32
    %c0_i32_0 = arith.constant 0 : i32
    %c0_i32_1 = arith.constant 0 : i32
    return %c0_i32, %c0_i32_0 : i32, i32
  }
  func.func @transform_4(%arg0: i32, %arg1: i32) -> (i32, i32, i32) {
    %c0_i32 = arith.constant 0 : i32
    %c0_i32_0 = arith.constant 0 : i32
    return %arg0, %arg1, %c0_i32 : i32, i32, i32
  }
}

</mosaic_0001>

<llo_original>
// kernel: tpu_custom_call.1
$region0: #{tpu_custom_call.1}
  #allocation0 [shape = 'u32[]', space=smem, size = 0x4, offset = 0x4, fixed_abs, tag = 'smem constant byte address 0x4 - core index']
  #allocation1 [shape = 'u32[144,128]{1,0:T(1,128)}', space=vmem, size = 0x12000, scoped, tag = 'internal scratch']
  %s0 = inlined_call_operand.hbm [shape: f32[2,32,128], index: 0, kind: input, shape index: {}]
  %s1 = inlined_call_operand.hbm [shape: f32[2,1,8,128], index: 1, kind: input, shape index: {}]
  %s2 = inlined_call_operand.hbm [shape: f32[384,128], index: 2, kind: input, shape index: {}]
  %s3 = inlined_call_operand.vmem [shape: f32[1,128], index: 3, kind: input, shape index: {}]
  %s4 = inlined_call_operand.hbm [shape: f32[2,16,128], index: 4, kind: output, shape index: {}]
  %s5 = sld [smem:[#allocation0]]
  $region61: #{tpu_custom_call.1} parent=0
    _
  %s7 = ssub.s32 1, %s5
  %s8 = scalar_select 0, %s7, %s5
  $region1: #{tpu_custom_call.1} parent=0
    #allocation2 [shape = 'u8[16384]{0}', space=vmem, size = 0x4000, scoped, tag = 'input window, operand 0']
    #allocation3 [shape = 's32[2]{0}', space=sflag, size = 0x8, scoped, tag = 'scoped memory for tpu_custom_call.1']
    #allocation4 [shape = 's32[2]{0}', space=sflag, size = 0x8, scoped, tag = 'scoped memory for tpu_custom_call.1']
    #allocation5 [shape = 'u8[8192]{0}', space=vmem, size = 0x2000, scoped, tag = 'input window, operand 1']
    #allocation6 [shape = 's32[2]{0}', space=sflag, size = 0x8, scoped, tag = 'scoped memory for tpu_custom_call.1']
    #allocation7 [shape = 'u8[196608]{0}', space=vmem, size = 0x30000, scoped, tag = 'input window, operand 2, single buffered']
    #allocation8 [shape = 'u8[16384]{0}', space=vmem, size = 0x4000, scoped, tag = 'output window, operand 0']
    %9 = vsyncpa [#allocation3], 0
    %s10 = scalar_lea.sflag [#allocation3], 1
    %11 = vsyncpa %s10, 0
    %12 = vsyncpa [#allocation6], 0
    %s13 = scalar_lea.sflag [#allocation6], 1
    %14 = vsyncpa %s13, 0
    %15 = vsyncpa [#allocation4], 0
    %s16 = scalar_lea.sflag [#allocation4], 1
    %17 = vsyncpa %s16, 0
    loop: start=0, step=1, limit=4
    $region2: #{tpu_custom_call.1} parent=1 // loop_pre_header
      _
    $region3: #{tpu_custom_call.1} parent=1 // loop_header
      %s19 = sphi 0, %s23
      %p20 = scmp.ge.s32.totalorder %s19, 4
      %s26 = sphi 0, %s38
      %s27 = sphi 0, %s34
      %s28 = sphi 0, %s26
      %s29 = sphi 0, %s27
      %s30 = sphi 0, %s28
      %s31 = sphi 0, %s29
      %s43 = sphi 0, %s45
      %s46 = sphi 0, %s43
      %s47 = sphi 0, %s46
      %s63 = sphi 0, %s47
      %s71 = sphi 0, %s73
      %s74 = sphi 0, %s71
      %s75 = sphi 0, %s74
      %s91 = sphi 0, %s75
      %s95 = sphi 0, %s95
      %s97 = sphi 0, %s95
      %s98 = sphi 0, %s97
      %s112 = sphi 0, %s98
      %s116 = sphi 0, %s116
      %s118 = sphi 0, %s116
      %s119 = sphi 0, %s118
      %s133 = sphi 0, %s119
      %s141 = sphi 0, %s143
      %s144 = sphi 0, %s141
      %s145 = sphi 0, %s144
      %s161 = sphi 0, %s145
    $region4: #{tpu_custom_call.1} parent=1 // loop_header_branch
      %22 = sbr.rel (%p20) target = $region8
    $region5: #{tpu_custom_call.1} parent=1 // loop_body
      %s24 = ssub.s32 %s19, 1
      %s25 = ssub.s32 %s19, 2
      %s32 = sadd.s32 1, %s27
      %p33 = scmp.ge.s32.totalorder %s32, 1
      %s34 = scalar_select %p33, 0, %s32
      %s35 = sadd.s32 1, %s26
      %s36 = scalar_select %p33, %s35, %s26
      %p37 = scmp.ge.s32.totalorder %s36, 2
      %s38 = scalar_select %p37, 0, %s36
      %s39 = ssub.s32 %s26, %s38
      %s40 = ssub.s32 %s27, %s34
      %s41 = sor.u32 %s39, %s40
      %p42 = scmp.eq.s32.totalorder %s41, 0
      %s44 = sadd.s32 %s43, 1
      %s45 = scalar_select %p42, %s43, %s44
      %p48 = pneg %p42
      %p49 = scmp.eq.s32.totalorder %s19, 1
      %p50 = por %p48, %p49
      %p51 = scmp.ne.s32.totalorder %s43, %s46
      %p52 = scmp.eq.s32.totalorder %s19, 0
      %p53 = por %p51, %p52
      %p54 = scmp.ne.s32.totalorder %s43, %s46
      %p55 = scmp.eq.s32.totalorder %s24, 1
      %p56 = por %p54, %p55
      %p57 = scmp.ne.s32.totalorder %s46, %s47
      %p58 = scmp.eq.s32.totalorder %s24, 0
      %p59 = por %p57, %p58
      %p60 = scmp.ne.s32.totalorder %s46, %s47
      %p61 = scmp.eq.s32.totalorder %s25, 1
      %p62 = por %p60, %p61
      %p64 = scmp.ne.s32.totalorder %s47, %s63
      %p65 = scmp.eq.s32.totalorder %s25, 0
      %p66 = por %p64, %p65
      %s67 = ssub.s32 %s26, %s38
      %s68 = ssub.s32 %s27, %s34
      %s69 = sor.u32 %s67, %s68
      %p70 = scmp.eq.s32.totalorder %s69, 0
      %s72 = sadd.s32 %s71, 1
      %s73 = scalar_select %p70, %s71, %s72
      %p76 = pneg %p70
      %p77 = scmp.eq.s32.totalorder %s19, 1
      %p78 = por %p76, %p77
      %p79 = scmp.ne.s32.totalorder %s71, %s74
      %p80 = scmp.eq.s32.totalorder %s19, 0
      %p81 = por %p79, %p80
      %p82 = scmp.ne.s32.totalorder %s71, %s74
      %p83 = scmp.eq.s32.totalorder %s24, 1
      %p84 = por %p82, %p83
      %p85 = scmp.ne.s32.totalorder %s74, %s75
      %p86 = scmp.eq.s32.totalorder %s24, 0
      %p87 = por %p85, %p86
      %p88 = scmp.ne.s32.totalorder %s74, %s75
      %p89 = scmp.eq.s32.totalorder %s25, 1
      %p90 = por %p88, %p89
      %p92 = scmp.ne.s32.totalorder %s75, %s91
      %p93 = scmp.eq.s32.totalorder %s25, 0
      %p94 = por %p92, %p93
      %s96 = sadd.s32 %s95, 1
      %p99 = scmp.eq.s32.totalorder %s19, 1
      %p100 = scmp.ne.s32.totalorder %s95, %s97
      %p101 = scmp.eq.s32.totalorder %s19, 0
      %p102 = por %p100, %p101
      %p103 = scmp.ne.s32.totalorder %s95, %s97
      %p104 = scmp.eq.s32.totalorder %s24, 1
      %p105 = por %p103, %p104
      %p106 = scmp.ne.s32.totalorder %s97, %s98
      %p107 = scmp.eq.s32.totalorder %s24, 0
      %p108 = por %p106, %p107
      %p109 = scmp.ne.s32.totalorder %s97, %s98
      %p110 = scmp.eq.s32.totalorder %s25, 1
      %p111 = por %p109, %p110
      %p113 = scmp.ne.s32.totalorder %s98, %s112
      %p114 = scmp.eq.s32.totalorder %s25, 0
      %p115 = por %p113, %p114
      %s117 = sadd.s32 %s116, 1
      %p120 = scmp.eq.s32.totalorder %s19, 1
      %p121 = scmp.ne.s32.totalorder %s116, %s118
      %p122 = scmp.eq.s32.totalorder %s19, 0
      %p123 = por %p121, %p122
      %p124 = scmp.ne.s32.totalorder %s116, %s118
      %p125 = scmp.eq.s32.totalorder %s24, 1
      %p126 = por %p124, %p125
      %p127 = scmp.ne.s32.totalorder %s118, %s119
      %p128 = scmp.eq.s32.totalorder %s24, 0
      %p129 = por %p127, %p128
      %p130 = scmp.ne.s32.totalorder %s118, %s119
      %p131 = scmp.eq.s32.totalorder %s25, 1
      %p132 = por %p130, %p131
      %p134 = scmp.ne.s32.totalorder %s119, %s133
      %p135 = scmp.eq.s32.totalorder %s25, 0
      %p136 = por %p134, %p135
      %s137 = ssub.s32 %s26, %s38
      %s138 = ssub.s32 %s27, %s34
      %s139 = sor.u32 %s137, %s138
      %p140 = scmp.eq.s32.totalorder %s139, 0
      %s142 = sadd.s32 %s141, 1
      %s143 = scalar_select %p140, %s141, %s142
      %p146 = pneg %p140
      %p147 = scmp.eq.s32.totalorder %s19, 1
      %p148 = por %p146, %p147
      %p149 = scmp.ne.s32.totalorder %s141, %s144
      %p150 = scmp.eq.s32.totalorder %s19, 0
      %p151 = por %p149, %p150
      %p152 = scmp.ne.s32.totalorder %s141, %s144
      %p153 = scmp.eq.s32.totalorder %s24, 1
      %p154 = por %p152, %p153
      %p155 = scmp.ne.s32.totalorder %s144, %s145
      %p156 = scmp.eq.s32.totalorder %s24, 0
      %p157 = por %p155, %p156
      %p158 = scmp.ne.s32.totalorder %s144, %s145
      %p159 = scmp.eq.s32.totalorder %s25, 1
      %p160 = por %p158, %p159
      %p162 = scmp.ne.s32.totalorder %s145, %s161
      %p163 = scmp.eq.s32.totalorder %s25, 0
      %p164 = por %p162, %p163
      %p165 = scmp.le.s32.totalorder 1, %s19
      %p166 = scmp.lt.s32.totalorder %s19, 3
      %p167 = pnand %p165, %p166
      %p168 = pneg %p167
      // Predicated region
      $region9: #{tpu_custom_call.1} parent=5 // pred_check
        _
      $region10: #{tpu_custom_call.1} parent=5 // pred_check_branch
        %170 = sbr.rel (%p167) target = $region12
      $region11: #{tpu_custom_call.1} parent=5 // pred_region
        %s171 = ssub.s32 %s19, 1
        // Predicated region
        $region13: #{tpu_custom_call.1} parent=11 // pred_check
          %p172 = pneg %p108
        $region14: #{tpu_custom_call.1} parent=11 // pred_check_branch
          %174 = sbr.rel (%p172) target = $region16
        $region15: #{tpu_custom_call.1} parent=11 // pred_region
          %s176 = ssub.s32 6144, 6144
          %177 = vsyncadd [#allocation6], %s176
          %s178 = sshll.u32 [#allocation7], 4
          %s179 = int_to_ptr.vmem [resolvable:$true] %s178
          %184 = dma.hbm_to_vmem [thread:$0]  %s2, 6144, %s179, [#allocation6], 128, 128, 8
        $region16: #{tpu_custom_call.1} parent=11 // pred_fallthru
          _
        // Predicated region
        $region17: #{tpu_custom_call.1} parent=11 // pred_check
          %p185 = pneg %p129
        $region18: #{tpu_custom_call.1} parent=11 // pred_check_branch
          %187 = sbr.rel (%p185) target = $region20
        $region19: #{tpu_custom_call.1} parent=11 // pred_region
          _
        $region20: #{tpu_custom_call.1} parent=11 // pred_fallthru
          _
      $region12: #{tpu_custom_call.1} parent=5 // pred_fallthru
        _
      %p188 = scmp.lt.s32.totalorder %s19, 2
      // Predicated region
      $region21: #{tpu_custom_call.1} parent=5 // pred_check
        %p189 = pneg %p188
      $region22: #{tpu_custom_call.1} parent=5 // pred_check_branch
        %191 = sbr.rel (%p189) target = $region24
      $region23: #{tpu_custom_call.1} parent=5 // pred_region
        // Predicated region
        $region25: #{tpu_custom_call.1} parent=23 // pred_check
          %p192 = pneg %p53
        $region26: #{tpu_custom_call.1} parent=23 // pred_check_branch
          %194 = sbr.rel (%p192) target = $region28
        $region27: #{tpu_custom_call.1} parent=23 // pred_region
          %s195 = sand.u32 %s43, 1
          %s196 = scalar_lea.sflag [#allocation3], %s195
          %s197 = sand.u32 %s43, 1
          %s198 = smul.addr %s197, 16
          %s199 = scalar_lea.vmem [#allocation2], %s198
          %s200 = smul.u32 2, %s27
          %s202 = ssub.s32 256, 256
          %203 = vsyncadd %s196, %s202
          %s204 = smul.addr %s26, 4
          %s205 = sadd.s32 %s200, %s204
          %s206 = smul.addr %s205, 128
          %s207 = scalar_lea.hbm %s0, %s206
          %s208 = sshll.u32 %s199, 4
          %s209 = int_to_ptr.vmem [resolvable:$true] %s208
          %214 = dma.hbm_to_vmem [thread:$0]  %s207, 256, %s209, %s196, 128, 128, 8
        $region28: #{tpu_custom_call.1} parent=23 // pred_fallthru
          _
        // Predicated region
        $region29: #{tpu_custom_call.1} parent=23 // pred_check
          %p215 = pneg %p81
        $region30: #{tpu_custom_call.1} parent=23 // pred_check_branch
          %217 = sbr.rel (%p215) target = $region32
        $region31: #{tpu_custom_call.1} parent=23 // pred_region
          %s218 = sand.u32 %s19, 1
          %s219 = scalar_lea.sflag [#allocation6], %s218
          %s220 = sand.u32 %s71, 1
          %s221 = smul.addr %s220, 8
          %s222 = scalar_lea.vmem [#allocation5], %s221
          %s224 = ssub.s32 128, 128
          %225 = vsyncadd %s219, %s224
          %s226 = sadd.s32 %s27, %s26
          %s227 = smul.addr %s226, 128
          %s228 = scalar_lea.hbm %s1, %s227
          %s230 = sshll.u32 %s222, 4
          %s231 = int_to_ptr.vmem [resolvable:$true] %s230
          %233 = dma.hbm_to_vmem [thread:$0]  %s228, 128, %s231, %s219
        $region32: #{tpu_custom_call.1} parent=23 // pred_fallthru
          _
      $region24: #{tpu_custom_call.1} parent=5 // pred_fallthru
        _
      %p234 = scmp.le.s32.totalorder 1, %s19
      %p235 = scmp.lt.s32.totalorder %s19, 3
      %p236 = pnand %p234, %p235
      %p237 = pneg %p236
      // Predicated region
      $region33: #{tpu_custom_call.1} parent=5 // pred_check
        _
      $region34: #{tpu_custom_call.1} parent=5 // pred_check_branch
        %239 = sbr.rel (%p236) target = $region36
      $region35: #{tpu_custom_call.1} parent=5 // pred_region
        %s240 = ssub.s32 %s19, 1
        %s241 = sand.u32 %s46, 1
        %s242 = scalar_lea.sflag [#allocation3], %s241
        %s243 = sand.u32 %s46, 1
        %s244 = smul.addr %s243, 16
        %s245 = scalar_lea.vmem [#allocation2], %s244
        // Predicated region
        $region37: #{tpu_custom_call.1} parent=35 // pred_check
          %p246 = pneg %p59
        $region38: #{tpu_custom_call.1} parent=35 // pred_check_branch
          %248 = sbr.rel (%p246) target = $region40
        $region39: #{tpu_custom_call.1} parent=35 // pred_region
          %249 = dma.done %s242, 256
        $region40: #{tpu_custom_call.1} parent=35 // pred_fallthru
          _
        %s250 = sand.u32 %s24, 1
        %s251 = scalar_lea.sflag [#allocation6], %s250
        %s252 = sand.u32 %s74, 1
        %s253 = smul.addr %s252, 8
        %s254 = scalar_lea.vmem [#allocation5], %s253
        // Predicated region
        $region41: #{tpu_custom_call.1} parent=35 // pred_check
          %p255 = pneg %p87
        $region42: #{tpu_custom_call.1} parent=35 // pred_check_branch
          %257 = sbr.rel (%p255) target = $region44
        $region43: #{tpu_custom_call.1} parent=35 // pred_region
          %258 = dma.done %s251, 128
        $region44: #{tpu_custom_call.1} parent=35 // pred_fallthru
          _
        // Predicated region
        $region45: #{tpu_custom_call.1} parent=35 // pred_check
          %p259 = pneg %p108
        $region46: #{tpu_custom_call.1} parent=35 // pred_check_branch
          %261 = sbr.rel (%p259) target = $region48
        $region47: #{tpu_custom_call.1} parent=35 // pred_region
          %262 = dma.done [#allocation6], 6144
        $region48: #{tpu_custom_call.1} parent=35 // pred_fallthru
          _
        %s263 = sand.u32 %s46, 1
        %s264 = scalar_lea.sflag [#allocation3], %s263
        %s265 = sand.u32 %s46, 1
        %s266 = smul.addr %s265, 16
        %s267 = scalar_lea.vmem [#allocation2], %s266
        %p268 = pneg %p59
        %p269 = pneg %p56
        %s270 = sand.u32 %s24, 1
        %s271 = scalar_lea.sflag [#allocation6], %s270
        %s272 = sand.u32 %s74, 1
        %s273 = smul.addr %s272, 8
        %s274 = scalar_lea.vmem [#allocation5], %s273
        %p275 = pneg %p87
        %p276 = pneg %p84
        %p277 = pneg %p108
        %p278 = pneg %p105
        %p279 = pneg %p129
        %p280 = pneg %p126
        %p281 = pneg %p157
        %p282 = pneg %p154
        %s283 = sand.u32 %s144, 1
        %s284 = scalar_lea.sflag [#allocation4], %s283
        %s285 = sand.u32 %s144, 1
        %s286 = smul.addr %s285, 16
        %s287 = scalar_lea.vmem [#allocation8], %s286
        %s288 = smul.u32 2, %s29
        %s289 = smul.u32 2, %s29
        %v290 = vld [vmem:[%s245] sm:$0xff]
        %v291 = vld [vmem:[%s245 + $0x8] sm:$0xff]
        %v292 = vld [vmem:[%s254] sm:$0xff]
        %v293 = vld [vmem:[%s3] sm:$0x1]
        %v295 = vlaneseq
        %v296 = vshrl.u32 %v295, 7
        %v297 = vsub.s32 0, %v296
        %v298 = vrot.slane %v293, %v297
        %vm303 = vcmask 1046528
        %v304 = vrot.slane %v290, 1
        %v305 = vrot.slane %v291, 1
        %v306 = vsel %vm303, %v304, %v305
        %v307 = vrot.slane %v292, 1
        %v308 = vsel %vm303, %v305, %v307
        %vm311 = vcmask 1045504
        %v312 = vrot.slane %v290, 2
        %v313 = vrot.slane %v291, 2
        %v314 = vsel %vm311, %v312, %v313
        %v315 = vrot.slane %v292, 2
        %v316 = vsel %vm311, %v313, %v315
        %v319 = vld [vmem:[#allocation7] sm:$0xff]
        %v320 = vld [vmem:[#allocation7 + $0x8] sm:$0xff]
        %v321 = vld [vmem:[#allocation7 + $0x10] sm:$0xff]
        %v322 = vld [vmem:[#allocation7 + $0x18] sm:$0xff]
        %v323 = vld [vmem:[#allocation7 + $0x20] sm:$0xff]
        %v324 = vld [vmem:[#allocation7 + $0x28] sm:$0xff]
        %v325 = vld [vmem:[#allocation7 + $0x30] sm:$0xff]
        %v326 = vld [vmem:[#allocation7 + $0x38] sm:$0xff]
        %v327 = vld [vmem:[#allocation7 + $0x40] sm:$0xff]
        %v328 = vld [vmem:[#allocation7 + $0x48] sm:$0xff]
        %v329 = vld [vmem:[#allocation7 + $0x50] sm:$0xff]
        %v330 = vld [vmem:[#allocation7 + $0x58] sm:$0xff]
        %v331 = vld [vmem:[#allocation7 + $0x60] sm:$0xff]
        %v332 = vld [vmem:[#allocation7 + $0x68] sm:$0xff]
        %v333 = vld [vmem:[#allocation7 + $0x70] sm:$0xff]
        %v334 = vld [vmem:[#allocation7 + $0x78] sm:$0xff]
        %v335 = vld [vmem:[#allocation7 + $0x80] sm:$0xff]
        %v336 = vld [vmem:[#allocation7 + $0x88] sm:$0xff]
        %v337 = vld [vmem:[#allocation7 + $0x90] sm:$0xff]
        %v338 = vld [vmem:[#allocation7 + $0x98] sm:$0xff]
        %v339 = vld [vmem:[#allocation7 + $0xa0] sm:$0xff]
        %v340 = vld [vmem:[#allocation7 + $0xa8] sm:$0xff]
        %v341 = vld [vmem:[#allocation7 + $0xb0] sm:$0xff]
        %v342 = vld [vmem:[#allocation7 + $0xb8] sm:$0xff]
        %v343 = vld [vmem:[#allocation7 + $0xc0] sm:$0xff]
        %v344 = vld [vmem:[#allocation7 + $0xc8] sm:$0xff]
        %v345 = vld [vmem:[#allocation7 + $0xd0] sm:$0xff]
        %v346 = vld [vmem:[#allocation7 + $0xd8] sm:$0xff]
        %v347 = vld [vmem:[#allocation7 + $0xe0] sm:$0xff]
        %v348 = vld [vmem:[#allocation7 + $0xe8] sm:$0xff]
        %v349 = vld [vmem:[#allocation7 + $0xf0] sm:$0xff]
        %v350 = vld [vmem:[#allocation7 + $0xf8] sm:$0xff]
        %v351 = vld [vmem:[#allocation7 + $0x100] sm:$0xff]
        %v352 = vld [vmem:[#allocation7 + $0x108] sm:$0xff]
        %v353 = vld [vmem:[#allocation7 + $0x110] sm:$0xff]
        %v354 = vld [vmem:[#allocation7 + $0x118] sm:$0xff]
        %v355 = vld [vmem:[#allocation7 + $0x120] sm:$0xff]
        %v356 = vld [vmem:[#allocation7 + $0x128] sm:$0xff]
        %v357 = vld [vmem:[#allocation7 + $0x130] sm:$0xff]
        %v358 = vld [vmem:[#allocation7 + $0x138] sm:$0xff]
        %v359 = vld [vmem:[#allocation7 + $0x140] sm:$0xff]
        %v360 = vld [vmem:[#allocation7 + $0x148] sm:$0xff]
        %v361 = vld [vmem:[#allocation7 + $0x150] sm:$0xff]
        %v362 = vld [vmem:[#allocation7 + $0x158] sm:$0xff]
        %v363 = vld [vmem:[#allocation7 + $0x160] sm:$0xff]
        %v364 = vld [vmem:[#allocation7 + $0x168] sm:$0xff]
        %v365 = vld [vmem:[#allocation7 + $0x170] sm:$0xff]
        %v366 = vld [vmem:[#allocation7 + $0x178] sm:$0xff]
        %367 = vmatprep.subr.mxu0 0.0
        %368 = vmatpush1.msra.mxu0 %v319
        %369 = vmatprep.subr.mxu0 0.0
        %370 = vmatpush1.msra.mxu0 %v320
        %371 = vmatprep.subr.mxu0 0.0
        %372 = vmatpush1.msra.mxu0 %v321
        %373 = vmatprep.subr.mxu0 0.0
        %374 = vmatpush1.msra.mxu0 %v322
        %375 = vmatprep.subr.mxu0 0.0
        %376 = vmatpush1.msra.mxu0 %v323
        %377 = vmatprep.subr.mxu0 0.0
        %378 = vmatpush1.msra.mxu0 %v324
        %379 = vmatprep.subr.mxu0 0.0
        %380 = vmatpush1.msra.mxu0 %v325
        %381 = vmatprep.subr.mxu0 0.0
        %382 = vmatpush1.msra.mxu0 %v326
        %383 = vmatprep.subr.mxu0 0.0
        %384 = vmatpush1.msra.mxu0 %v327
        %385 = vmatprep.subr.mxu0 0.0
        %386 = vmatpush1.msra.mxu0 %v328
        %387 = vmatprep.subr.mxu0 0.0
        %388 = vmatpush1.msra.mxu0 %v329
        %389 = vmatprep.subr.mxu0 0.0
        %390 = vmatpush1.msra.mxu0 %v330
        %391 = vmatprep.subr.mxu0 0.0
        %392 = vmatpush1.msra.mxu0 %v331
        %393 = vmatprep.subr.mxu0 0.0
        %394 = vmatpush1.msra.mxu0 %v332
        %395 = vmatprep.subr.mxu0 0.0
        %396 = vmatpush1.msra.mxu0 %v333
        %397 = vmatprep.subr.mxu0 0.0
        %398 = vmatpush1.msra.mxu0 %v334
        %399 = vmatprep.subr.mxu0 0.0
        %400 = vmatpush1.msra.mxu0 %v335
        %401 = vmatprep.subr.mxu0 0.0
        %402 = vmatpush1.msra.mxu0 %v336
        %403 = vmatprep.subr.mxu0 0.0
        %404 = vmatpush1.msra.mxu0 %v337
        %405 = vmatprep.subr.mxu0 0.0
        %406 = vmatpush1.msra.mxu0 %v338
        %407 = vmatprep.subr.mxu0 0.0
        %408 = vmatpush1.msra.mxu0 %v339
        %409 = vmatprep.subr.mxu0 0.0
        %410 = vmatpush1.msra.mxu0 %v340
        %411 = vmatprep.subr.mxu0 0.0
        %412 = vmatpush1.msra.mxu0 %v341
        %413 = vmatprep.subr.mxu0 0.0
        %414 = vmatpush1.msra.mxu0 %v342
        %415 = vmatprep.subr.mxu0 0.0
        %416 = vmatpush1.msra.mxu0 %v343
        %417 = vmatprep.subr.mxu0 0.0
        %418 = vmatpush1.msra.mxu0 %v344
        %419 = vmatprep.subr.mxu0 0.0
        %420 = vmatpush1.msra.mxu0 %v345
        %421 = vmatprep.subr.mxu0 0.0
        %422 = vmatpush1.msra.mxu0 %v346
        %423 = vmatprep.subr.mxu0 0.0
        %424 = vmatpush1.msra.mxu0 %v347
        %425 = vmatprep.subr.mxu0 0.0
        %426 = vmatpush1.msra.mxu0 %v348
        %427 = vmatprep.subr.mxu0 0.0
        %428 = vmatpush1.msra.mxu0 %v349
        %429 = vmatprep.subr.mxu0 0.0
        %430 = vmatpush1.msra.mxu0 %v350
        %431 = vmatprep.mubr.f32.mxu0 %v306
        %432 = vmatmul.mubr.f32.gmra.mrb[0].mxu0 %v290
        %v433 = vpop.f32.mrb[0].mxu0
        %v434 = vadd.f32 0.0, %v433
        %v435 = vpop.f32.mrb[0].mxu0
        %436 = vmatprep.mubr.f32.mxu0 %v308
        %437 = vmatmul.mubr.f32.gmra.mrb[0].mxu0 %v291
        %v438 = vpop.f32.mrb[0].mxu0
        %v439 = vadd.f32 0.0, %v438
        %v440 = vpop.f32.mrb[0].mxu0
        %441 = vdwg.mxu0
        %442 = vmatprep.subr.mxu0 0.0
        %443 = vmatpush1.msra.mxu0 %v351
        %444 = vmatprep.subr.mxu0 0.0
        %445 = vmatpush1.msra.mxu0 %v352
        %446 = vmatprep.subr.mxu0 0.0
        %447 = vmatpush1.msra.mxu0 %v353
        %448 = vmatprep.subr.mxu0 0.0
        %449 = vmatpush1.msra.mxu0 %v354
        %450 = vmatprep.subr.mxu0 0.0
        %451 = vmatpush1.msra.mxu0 %v355
        %452 = vmatprep.subr.mxu0 0.0
        %453 = vmatpush1.msra.mxu0 %v356
        %454 = vmatprep.subr.mxu0 0.0
        %455 = vmatpush1.msra.mxu0 %v357
        %456 = vmatprep.subr.mxu0 0.0
        %457 = vmatpush1.msra.mxu0 %v358
        %458 = vmatprep.subr.mxu0 0.0
        %459 = vmatpush1.msra.mxu0 %v359
        %460 = vmatprep.subr.mxu0 0.0
        %461 = vmatpush1.msra.mxu0 %v360
        %462 = vmatprep.subr.mxu0 0.0
        %463 = vmatpush1.msra.mxu0 %v361
        %464 = vmatprep.subr.mxu0 0.0
        %465 = vmatpush1.msra.mxu0 %v362
        %466 = vmatprep.subr.mxu0 0.0
        %467 = vmatpush1.msra.mxu0 %v363
        %468 = vmatprep.subr.mxu0 0.0
        %469 = vmatpush1.msra.mxu0 %v364
        %470 = vmatprep.subr.mxu0 0.0
        %471 = vmatpush1.msra.mxu0 %v365
        %472 = vmatprep.subr.mxu0 0.0
        %473 = vmatpush1.msra.mxu0 %v366
        %474 = vmatprep.subr.mxu0 0.0
        %475 = vmatpush1.msra.mxu0 0.0
        %476 = vmatprep.subr.mxu0 0.0
        %477 = vmatpush1.msra.mxu0 0.0
        %478 = vmatprep.subr.mxu0 0.0
        %479 = vmatpush1.msra.mxu0 0.0
        %480 = vmatprep.subr.mxu0 0.0
        %481 = vmatpush1.msra.mxu0 0.0
        %482 = vmatprep.subr.mxu0 0.0
        %483 = vmatpush1.msra.mxu0 0.0
        %484 = vmatprep.subr.mxu0 0.0
        %485 = vmatpush1.msra.mxu0 0.0
        %486 = vmatprep.subr.mxu0 0.0
        %487 = vmatpush1.msra.mxu0 0.0
        %488 = vmatprep.subr.mxu0 0.0
        %489 = vmatpush1.msra.mxu0 0.0
        %490 = vmatprep.subr.mxu0 0.0
        %491 = vmatpush1.msra.mxu0 0.0
        %492 = vmatprep.subr.mxu0 0.0
        %493 = vmatpush1.msra.mxu0 0.0
        %494 = vmatprep.subr.mxu0 0.0
        %495 = vmatpush1.msra.mxu0 0.0
        %496 = vmatprep.subr.mxu0 0.0
        %497 = vmatpush1.msra.mxu0 0.0
        %498 = vmatprep.subr.mxu0 0.0
        %499 = vmatpush1.msra.mxu0 0.0
        %500 = vmatprep.subr.mxu0 0.0
        %501 = vmatpush1.msra.mxu0 0.0
        %502 = vmatprep.subr.mxu0 0.0
        %503 = vmatpush1.msra.mxu0 0.0
        %504 = vmatprep.subr.mxu0 0.0
        %505 = vmatpush1.msra.mxu0 0.0
        %506 = vmatprep.mubr.f32.mxu0 0.0
        %507 = vmatmul.mubr.f32.gmra.mrb[0].mxu0 %v314
        %v508 = vpop.f32.mrb[0].mxu0
        %v509 = vadd.f32 %v434, %v508
        %v510 = vpop.f32.mrb[0].mxu0
        %511 = vmatprep.mubr.f32.mxu0 0.0
        %512 = vmatmul.mubr.f32.gmra.mrb[0].mxu0 %v316
        %v513 = vpop.f32.mrb[0].mxu0
        %v514 = vadd.f32 %v439, %v513
        %v515 = vpop.f32.mrb[0].mxu0
        %516 = vdwg.mxu0
        %v517 = vadd.f32 %v298, %v509
        %v518 = vadd.f32 %v298, %v514
        %519 = vst [vmem:[%s287] sm:$0xff] %v517
        %520 = vst [vmem:[%s287 + $0x8] sm:$0xff] %v518
        %s521 = sand.u32 %s144, 1
        %s522 = scalar_lea.sflag [#allocation4], %s521
        %s523 = sand.u32 %s144, 1
        %s524 = smul.addr %s523, 16
        %s525 = scalar_lea.vmem [#allocation8], %s524
        // Predicated region
        $region49: #{tpu_custom_call.1} parent=35 // pred_check
          %p526 = pneg %p154
        $region50: #{tpu_custom_call.1} parent=35 // pred_check_branch
          %528 = sbr.rel (%p526) target = $region52
        $region51: #{tpu_custom_call.1} parent=35 // pred_region
          %s529 = smul.u32 2, %s29
          %s531 = ssub.s32 256, 256
          %532 = vsyncadd %s522, %s531
          %s533 = smul.addr %s28, 2
          %s534 = sadd.s32 %s529, %s533
          %s535 = smul.addr %s534, 128
          %s536 = scalar_lea.hbm %s4, %s535
          %s537 = sshll.u32 %s525, 4
          %s538 = int_to_ptr.vmem [resolvable:$true] %s537
          %543 = dma.vmem_to_hbm [thread:$0]  %s538, 256, %s536, %s522, 128, 128, 8
        $region52: #{tpu_custom_call.1} parent=35 // pred_fallthru
          _
      $region36: #{tpu_custom_call.1} parent=5 // pred_fallthru
        _
      %p544 = scmp.le.s32.totalorder 2, %s19
      // Predicated region
      $region53: #{tpu_custom_call.1} parent=5 // pred_check
        %p545 = pneg %p544
      $region54: #{tpu_custom_call.1} parent=5 // pred_check_branch
        %547 = sbr.rel (%p545) target = $region56
      $region55: #{tpu_custom_call.1} parent=5 // pred_region
        %s548 = ssub.s32 %s19, 2
        // Predicated region
        $region57: #{tpu_custom_call.1} parent=55 // pred_check
          %p549 = pneg %p160
        $region58: #{tpu_custom_call.1} parent=55 // pred_check_branch
          %551 = sbr.rel (%p549) target = $region60
        $region59: #{tpu_custom_call.1} parent=55 // pred_region
          %s552 = sand.u32 %s145, 1
          %s553 = scalar_lea.sflag [#allocation4], %s552
          %s554 = sand.u32 %s145, 1
          %s555 = smul.addr %s554, 16
          %s556 = scalar_lea.vmem [#allocation8], %s555
          %557 = dma.done %s553, 256
        $region60: #{tpu_custom_call.1} parent=55 // pred_fallthru
          _
      $region56: #{tpu_custom_call.1} parent=5 // pred_fallthru
        _
    $region6: #{tpu_custom_call.1} parent=1 // loop_footer
      %s23 = sadd.s32 1, %s19
    $region7: #{tpu_custom_call.1} parent=1 // loop_footer_branch
      %18 = sbr.rel target = $region3
    $region8: #{tpu_custom_call.1} parent=1 // loop_exit
      _
    %558 = vsyncpa [#allocation3], 1
    %s559 = scalar_lea.sflag [#allocation3], 1
    %560 = vsyncpa %s559, 1
    %561 = vsyncpa [#allocation6], 1
    %s562 = scalar_lea.sflag [#allocation6], 1
    %563 = vsyncpa %s562, 1
    %564 = vsyncpa [#allocation4], 1
    %s565 = scalar_lea.sflag [#allocation4], 1
    %566 = vsyncpa %s565, 1

</llo_original>
